<compile_context>
chip_gen: v7x
topology: tpu7x:2x2x1
jax: 0.10.0
libtpu: 0.0.40
codegen_flags: <defaults>
</compile_context>

<pallas_src>
import jax
import jax.numpy as jnp
from jax.experimental import pallas as pl
from jax.experimental.pallas import tpu as pltpu


def cvae_kernel(xy_ref, eps_ref, w1_ref, wmulv_ref, w2z_ref, w2y_ref, w3_ref,
                b_ref, out_ref):
    H = w1_ref.shape[1]
    Z = eps_ref.shape[1]
    D = w3_ref.shape[1]
    mdt = w1_ref.dtype                       # matmul operand dtype (f32 or bf16)

    xy = xy_ref[...]                         # (TB, D+L) f32
    y = xy[:, D:]                            # (TB, L) static lane slice
    eps = eps_ref[...]

    b = b_ref[...]                           # (1, H + 2Z + H + D) f32
    b1 = b[:, :H]
    bmlv = b[:, H:H + 2 * Z]
    b2 = b[:, H + 2 * Z:2 * H + 2 * Z]
    b3 = b[:, 2 * H + 2 * Z:]

    # ----- encode: h = relu(fc1([x, y])) -- one K = D+L matmul -----
    h = jnp.dot(xy.astype(mdt), w1_ref[...],
                preferred_element_type=jnp.float32) + b1
    h = jnp.maximum(h, 0.0)

    # ----- fused mu/logvar head: single (H, 2Z) matmul, static lane split -----
    mulv = jnp.dot(h.astype(mdt), wmulv_ref[...],
                   preferred_element_type=jnp.float32) + bmlv
    mu = mulv[:, :Z]
    logvar = mulv[:, Z:]

    # ----- reparameterize (all f32 on VPU/EUP): z = mu + eps * exp(0.5*logvar) -----
    z = mu + eps * jnp.exp(0.5 * logvar)

    # ----- decode: recon = fc3(relu(fc2([z, y]))) -----
    h2 = (jnp.dot(z.astype(mdt), w2z_ref[...], preferred_element_type=jnp.float32)
          + jnp.dot(y.astype(mdt), w2y_ref[...], preferred_element_type=jnp.float32)
          + b2)
    h2 = jnp.maximum(h2, 0.0)
    recon = jnp.dot(h2.astype(mdt), w3_ref[...],
                    preferred_element_type=jnp.float32) + b3

    # single lane-dense output slab: [recon | mu | logvar]
    out_ref[...] = jnp.concatenate([recon, mulv], axis=1)


def prepare_params(params, matmul_dtype=jnp.float32):
    """One-time packing of PyTorch-convention weights for the kernel.

    params: fc1_w (H, D+L), fc1_b (H,), fc_mu_w (Z, H), fc_mu_b (Z,),
            fc_logvar_w (Z, H), fc_logvar_b (Z,), fc2_w (H, Z+L), fc2_b (H,),
            fc3_w (D, H), fc3_b (D,)
    Returns pre-transposed / fused weights (optionally bf16) + packed f32 biases.
    """
    Z = params["fc_mu_w"].shape[0]

    w1 = params["fc1_w"].T.astype(matmul_dtype)                     # (D+L, H)
    wmulv = jnp.concatenate(
        [params["fc_mu_w"].T, params["fc_logvar_w"].T], axis=1
    ).astype(matmul_dtype)                                          # (H, 2Z)
    w2 = params["fc2_w"].T                                          # (Z+L, H)
    w2z = w2[:Z].astype(matmul_dtype)                               # (Z, H)
    w2y = w2[Z:].astype(matmul_dtype)                               # (L, H)
    w3 = params["fc3_w"].T.astype(matmul_dtype)                     # (H, D)
    b_all = jnp.concatenate(
        [params["fc1_b"], params["fc_mu_b"], params["fc_logvar_b"],
         params["fc2_b"], params["fc3_b"]]
    ).astype(jnp.float32).reshape(1, -1)                            # (1, H+2Z+H+D)

    return dict(w1=w1, wmulv=wmulv, w2z=w2z, w2y=w2y, w3=w3, b_all=b_all)


def _pick_batch_tile(B):
    if B <= 512:
        return B
    for tb in (512, 256, 128):
        if B % tb == 0:
            return tb
    return B


def conditional_vae_forward(x, y, eps, packed):
    """Run the CVAE forward pass in one Pallas kernel. Returns (recon, mu, logvar)."""
    B, D = x.shape
    L = y.shape[1]
    H = packed["w1"].shape[1]
    Z = packed["w2z"].shape[0]
    DL = D + L
    n_out = D + 2 * Z

    xy = jnp.concatenate([x, y], axis=1).astype(jnp.float32)        # (B, D+L)
    eps = eps.astype(jnp.float32)

    TB = _pick_batch_tile(B)
    grid = (B // TB,)

    out = pl.pallas_call(
        cvae_kernel,
        out_shape=jax.ShapeDtypeStruct((B, n_out), jnp.float32),
        grid_spec=pltpu.PrefetchScalarGridSpec(
            num_scalar_prefetch=0,
            grid=grid,
            in_specs=[
                pl.BlockSpec((TB, DL), lambda i: (i, 0)),               # xy
                pl.BlockSpec((TB, Z), lambda i: (i, 0)),                # eps
                pl.BlockSpec((DL, H), lambda i: (0, 0)),                # w1 (resident)
                pl.BlockSpec((H, 2 * Z), lambda i: (0, 0)),             # w_mu|logvar
                pl.BlockSpec((Z, H), lambda i: (0, 0)),                 # w2z
                pl.BlockSpec((L, H), lambda i: (0, 0)),                 # w2y
                pl.BlockSpec((H, D), lambda i: (0, 0)),                 # w3
                pl.BlockSpec((1, 2 * H + 2 * Z + D), lambda i: (0, 0)), # packed biases
            ],
            out_specs=pl.BlockSpec((TB, n_out), lambda i: (i, 0)),
        ),
        compiler_params=pltpu.CompilerParams(
            dimension_semantics=("parallel",),
        ),
    )(xy, eps, packed["w1"], packed["wmulv"], packed["w2z"], packed["w2y"],
      packed["w3"], packed["b_all"])

    recon = out[:, :D]
    mu = out[:, D:D + Z]
    logvar = out[:, D + Z:]
    return recon, mu, logvar


def _torch_linear_init(key, out_features, in_features):
    """Deterministic stand-in for nn.Linear default init: U(-1/sqrt(in), 1/sqrt(in))."""
    kw, kb = jax.random.split(key)
    bound = 1.0 / jnp.sqrt(jnp.float32(in_features))
    w = jax.random.uniform(kw, (out_features, in_features), jnp.float32, -bound, bound)
    b = jax.random.uniform(kb, (out_features,), jnp.float32, -bound, bound)
    return w, b


def _reference_forward(x, y, eps, p):
    """Pure-JAX reference with identical math (for correctness check)."""
    xy = jnp.concatenate([x, y], axis=1)
    h = jax.nn.relu(xy @ p["fc1_w"].T + p["fc1_b"])
    mu = h @ p["fc_mu_w"].T + p["fc_mu_b"]
    logvar = h @ p["fc_logvar_w"].T + p["fc_logvar_b"]
    z = mu + eps * jnp.exp(0.5 * logvar)
    zy = jnp.concatenate([z, y], axis=1)
    h2 = jax.nn.relu(zy @ p["fc2_w"].T + p["fc2_b"])
    recon = h2 @ p["fc3_w"].T + p["fc3_b"]
    return recon, mu, logvar


if __name__ == "__main__":
    # Small shapes consistent with the module's fully-connected forward.
    B, input_dim, label_dim, hidden_dim, latent_dim = 8, 16, 4, 32, 8

    key = jax.random.PRNGKey(0)
    kx, ky, keps, k1, k2, k3, k4, k5 = jax.random.split(key, 8)

    x = jax.random.normal(kx, (B, input_dim), jnp.float32)
    y = jax.nn.one_hot(
        jax.random.randint(ky, (B,), 0, label_dim), label_dim
    ).astype(jnp.float32)
    eps = jax.random.normal(keps, (B, latent_dim), jnp.float32)

    fc1_w, fc1_b = _torch_linear_init(k1, hidden_dim, input_dim + label_dim)
    fc_mu_w, fc_mu_b = _torch_linear_init(k2, latent_dim, hidden_dim)
    fc_lv_w, fc_lv_b = _torch_linear_init(k3, latent_dim, hidden_dim)
    fc2_w, fc2_b = _torch_linear_init(k4, hidden_dim, latent_dim + label_dim)
    fc3_w, fc3_b = _torch_linear_init(k5, input_dim, hidden_dim)

    params = {
        "fc1_w": fc1_w, "fc1_b": fc1_b,
        "fc_mu_w": fc_mu_w, "fc_mu_b": fc_mu_b,
        "fc_logvar_w": fc_lv_w, "fc_logvar_b": fc_lv_b,
        "fc2_w": fc2_w, "fc2_b": fc2_b,
        "fc3_w": fc3_w, "fc3_b": fc3_b,
    }

    fwd = jax.jit(conditional_vae_forward)
    r_ref, mu_ref, lv_ref = _reference_forward(x, y, eps, params)

    # --- default f32 path: strict correctness check ---
    packed_f32 = prepare_params(params)                # done ONCE, not per call
    recon, mu, logvar = fwd(x, y, eps, packed_f32)
    jax.block_until_ready((recon, mu, logvar))
    assert jnp.allclose(recon, r_ref, atol=1e-5, rtol=1e-5)
    assert jnp.allclose(mu, mu_ref, atol=1e-5, rtol=1e-5)
    assert jnp.allclose(logvar, lv_ref, atol=1e-5, rtol=1e-5)

    # --- bf16 matmul-operand path (v6e/v7x fast path; f32 accumulation) ---
    packed_bf16 = prepare_params(params, matmul_dtype=jnp.bfloat16)
    recon_b, mu_b, lv_b = fwd(x, y, eps, packed_bf16)
    jax.block_until_ready((recon_b, mu_b, lv_b))
    assert jnp.allclose(recon_b, r_ref, atol=1e-1, rtol=1e-1)
    assert jnp.allclose(mu_b, mu_ref, atol=1e-1, rtol=1e-1)
    assert jnp.allclose(lv_b, lv_ref, atol=1e-1, rtol=1e-1)

    print("KERNEL_OK")
</pallas_src>

<mosaic_0001>
module attributes {stable_mosaic.version = 11 : i64} {
  func.func @cvae_kernel(%arg0: i32, %arg1: memref<8x20xf32, #tpu.memory_space<vmem>>, %arg2: memref<8x8xf32, #tpu.memory_space<vmem>>, %arg3: memref<20x32xf32, #tpu.memory_space<vmem>>, %arg4: memref<32x16xf32, #tpu.memory_space<vmem>>, %arg5: memref<8x32xf32, #tpu.memory_space<vmem>>, %arg6: memref<4x32xf32, #tpu.memory_space<vmem>>, %arg7: memref<32x16xf32, #tpu.memory_space<vmem>>, %arg8: memref<1x96xf32, #tpu.memory_space<vmem>>, %arg9: memref<8x32xf32, #tpu.memory_space<vmem>>) attributes {dimension_semantics = [#tpu.dimension_semantics<parallel>], iteration_bounds = array<i64: 1>, scalar_prefetch = 0 : i64, scratch_operands = 0 : i64, tpu.core_type = #tpu.core_type<tc>, window_params = [{transform_indices = @transform_0, window_bounds = array<i64: 8, 20>}, {transform_indices = @transform_1, window_bounds = array<i64: 8, 8>}, {pipeline_mode = #tpu.pipeline_mode<synchronous>, transform_indices = @transform_2, window_bounds = array<i64: 20, 32>}, {pipeline_mode = #tpu.pipeline_mode<synchronous>, transform_indices = @transform_3, window_bounds = array<i64: 32, 16>}, {pipeline_mode = #tpu.pipeline_mode<synchronous>, transform_indices = @transform_4, window_bounds = array<i64: 8, 32>}, {pipeline_mode = #tpu.pipeline_mode<synchronous>, transform_indices = @transform_5, window_bounds = array<i64: 4, 32>}, {pipeline_mode = #tpu.pipeline_mode<synchronous>, transform_indices = @transform_6, window_bounds = array<i64: 32, 16>}, {pipeline_mode = #tpu.pipeline_mode<synchronous>, transform_indices = @transform_7, window_bounds = array<i64: 1, 96>}, {transform_indices = @transform_8, window_bounds = array<i64: 8, 32>}]} {
    %c0 = arith.constant 0 : index
    %c0_0 = arith.constant 0 : index
    %0 = vector.load %arg1[%c0, %c0_0] : memref<8x20xf32, #tpu.memory_space<vmem>>, vector<8x20xf32>
    %1 = vector.extract_strided_slice %0 {offsets = [0, 16], sizes = [8, 4], strides = [1, 1]} : vector<8x20xf32> to vector<8x4xf32>
    %c0_1 = arith.constant 0 : index
    %c0_2 = arith.constant 0 : index
    %2 = vector.load %arg2[%c0_1, %c0_2] : memref<8x8xf32, #tpu.memory_space<vmem>>, vector<8x8xf32>
    %c0_3 = arith.constant 0 : index
    %c0_4 = arith.constant 0 : index
    %3 = vector.load %arg8[%c0_3, %c0_4] : memref<1x96xf32, #tpu.memory_space<vmem>>, vector<1x96xf32>
    %4 = vector.extract_strided_slice %3 {offsets = [0, 0], sizes = [1, 32], strides = [1, 1]} : vector<1x96xf32> to vector<1x32xf32>
    %5 = vector.extract_strided_slice %3 {offsets = [0, 32], sizes = [1, 16], strides = [1, 1]} : vector<1x96xf32> to vector<1x16xf32>
    %6 = vector.extract_strided_slice %3 {offsets = [0, 48], sizes = [1, 32], strides = [1, 1]} : vector<1x96xf32> to vector<1x32xf32>
    %7 = vector.extract_strided_slice %3 {offsets = [0, 80], sizes = [1, 16], strides = [1, 1]} : vector<1x96xf32> to vector<1x16xf32>
    %c0_5 = arith.constant 0 : index
    %c0_6 = arith.constant 0 : index
    %8 = vector.load %arg3[%c0_5, %c0_6] : memref<20x32xf32, #tpu.memory_space<vmem>>, vector<20x32xf32>
    %cst = arith.constant dense<0.000000e+00> : vector<8x32xf32>
    %9 = tpu.matmul %0, %8, %cst {dimension_numbers = #tpu.dot_dimension_numbers<[1], [0], [0], [1], [0, 0, 1, 1], [], []>} : vector<8x20xf32>, vector<20x32xf32>, vector<8x32xf32> -> vector<8x32xf32>
    %10 = vector.broadcast %4 : vector<1x32xf32> to vector<8x32xf32>
    %11 = arith.addf %9, %10 : vector<8x32xf32>
    %cst_7 = arith.constant 0.000000e+00 : f32
    %12 = vector.broadcast %cst_7 : f32 to vector<8x32xf32>
    %13 = arith.maximumf %11, %12 : vector<8x32xf32>
    %c0_8 = arith.constant 0 : index
    %c0_9 = arith.constant 0 : index
    %14 = vector.load %arg4[%c0_8, %c0_9] : memref<32x16xf32, #tpu.memory_space<vmem>>, vector<32x16xf32>
    %cst_10 = arith.constant dense<0.000000e+00> : vector<8x16xf32>
    %15 = tpu.matmul %13, %14, %cst_10 {dimension_numbers = #tpu.dot_dimension_numbers<[1], [0], [0], [1], [0, 0, 1, 1], [], []>} : vector<8x32xf32>, vector<32x16xf32>, vector<8x16xf32> -> vector<8x16xf32>
    %16 = vector.broadcast %5 : vector<1x16xf32> to vector<8x16xf32>
    %17 = arith.addf %15, %16 : vector<8x16xf32>
    %18 = vector.extract_strided_slice %17 {offsets = [0, 0], sizes = [8, 8], strides = [1, 1]} : vector<8x16xf32> to vector<8x8xf32>
    %19 = vector.extract_strided_slice %17 {offsets = [0, 8], sizes = [8, 8], strides = [1, 1]} : vector<8x16xf32> to vector<8x8xf32>
    %cst_11 = arith.constant 5.000000e-01 : f32
    %20 = vector.broadcast %cst_11 : f32 to vector<8x8xf32>
    %21 = arith.mulf %20, %19 : vector<8x8xf32>
    %22 = math.exp %21 : vector<8x8xf32>
    %23 = arith.mulf %2, %22 : vector<8x8xf32>
    %24 = arith.addf %18, %23 : vector<8x8xf32>
    %c0_12 = arith.constant 0 : index
    %c0_13 = arith.constant 0 : index
    %25 = vector.load %arg5[%c0_12, %c0_13] : memref<8x32xf32, #tpu.memory_space<vmem>>, vector<8x32xf32>
    %cst_14 = arith.constant dense<0.000000e+00> : vector<8x32xf32>
    %26 = tpu.matmul %24, %25, %cst_14 {dimension_numbers = #tpu.dot_dimension_numbers<[1], [0], [0], [1], [0, 0, 1, 1], [], []>} : vector<8x8xf32>, vector<8x32xf32>, vector<8x32xf32> -> vector<8x32xf32>
    %c0_15 = arith.constant 0 : index
    %c0_16 = arith.constant 0 : index
    %27 = vector.load %arg6[%c0_15, %c0_16] : memref<4x32xf32, #tpu.memory_space<vmem>>, vector<4x32xf32>
    %cst_17 = arith.constant dense<0.000000e+00> : vector<8x32xf32>
    %28 = tpu.matmul %1, %27, %cst_17 {dimension_numbers = #tpu.dot_dimension_numbers<[1], [0], [0], [1], [0, 0, 1, 1], [], []>} : vector<8x4xf32>, vector<4x32xf32>, vector<8x32xf32> -> vector<8x32xf32>
    %29 = arith.addf %26, %28 : vector<8x32xf32>
    %30 = vector.broadcast %6 : vector<1x32xf32> to vector<8x32xf32>
    %31 = arith.addf %29, %30 : vector<8x32xf32>
    %cst_18 = arith.constant 0.000000e+00 : f32
    %32 = vector.broadcast %cst_18 : f32 to vector<8x32xf32>
    %33 = arith.maximumf %31, %32 : vector<8x32xf32>
    %c0_19 = arith.constant 0 : index
    %c0_20 = arith.constant 0 : index
    %34 = vector.load %arg7[%c0_19, %c0_20] : memref<32x16xf32, #tpu.memory_space<vmem>>, vector<32x16xf32>
    %cst_21 = arith.constant dense<0.000000e+00> : vector<8x16xf32>
    %35 = tpu.matmul %33, %34, %cst_21 {dimension_numbers = #tpu.dot_dimension_numbers<[1], [0], [0], [1], [0, 0, 1, 1], [], []>} : vector<8x32xf32>, vector<32x16xf32>, vector<8x16xf32> -> vector<8x16xf32>
    %36 = vector.broadcast %7 : vector<1x16xf32> to vector<8x16xf32>
    %37 = arith.addf %35, %36 : vector<8x16xf32>
    %38 = tpu.concatenate %37, %17 in 1 : vector<8x16xf32>, vector<8x16xf32> -> vector<8x32xf32>
    %c0_22 = arith.constant 0 : index
    %c0_23 = arith.constant 0 : index
    %39 = vector.load %arg9[%c0_22, %c0_23] : memref<8x32xf32, #tpu.memory_space<vmem>>, vector<8x32xf32>
    tpu.vector_store %arg9[%c0_22, %c0_23], %38 {strides = array<i32>} : memref<8x32xf32, #tpu.memory_space<vmem>>, vector<8x32xf32>,
    return
  }
  func.func @transform_0(%arg0: i32) -> (i32, i32) {
    %c0_i32 = arith.constant 0 : i32
    %c0_i32_0 = arith.constant 0 : i32
    return %arg0, %c0_i32 : i32, i32
  }
  func.func @transform_1(%arg0: i32) -> (i32, i32) {
    %c0_i32 = arith.constant 0 : i32
    %c0_i32_0 = arith.constant 0 : i32
    return %arg0, %c0_i32 : i32, i32
  }
  func.func @transform_2(%arg0: i32) -> (i32, i32) {
    %c0_i32 = arith.constant 0 : i32
    %c0_i32_0 = arith.constant 0 : i32
    %c0_i32_1 = arith.constant 0 : i32
    return %c0_i32, %c0_i32_0 : i32, i32
  }
  func.func @transform_3(%arg0: i32) -> (i32, i32) {
    %c0_i32 = arith.constant 0 : i32
    %c0_i32_0 = arith.constant 0 : i32
    %c0_i32_1 = arith.constant 0 : i32
    return %c0_i32, %c0_i32_0 : i32, i32
  }
  func.func @transform_4(%arg0: i32) -> (i32, i32) {
    %c0_i32 = arith.constant 0 : i32
    %c0_i32_0 = arith.constant 0 : i32
    %c0_i32_1 = arith.constant 0 : i32
    return %c0_i32, %c0_i32_0 : i32, i32
  }
  func.func @transform_5(%arg0: i32) -> (i32, i32) {
    %c0_i32 = arith.constant 0 : i32
    %c0_i32_0 = arith.constant 0 : i32
    %c0_i32_1 = arith.constant 0 : i32
    return %c0_i32, %c0_i32_0 : i32, i32
  }
  func.func @transform_6(%arg0: i32) -> (i32, i32) {
    %c0_i32 = arith.constant 0 : i32
    %c0_i32_0 = arith.constant 0 : i32
    %c0_i32_1 = arith.constant 0 : i32
    return %c0_i32, %c0_i32_0 : i32, i32
  }
  func.func @transform_7(%arg0: i32) -> (i32, i32) {
    %c0_i32 = arith.constant 0 : i32
    %c0_i32_0 = arith.constant 0 : i32
    %c0_i32_1 = arith.constant 0 : i32
    return %c0_i32, %c0_i32_0 : i32, i32
  }
  func.func @transform_8(%arg0: i32) -> (i32, i32) {
    %c0_i32 = arith.constant 0 : i32
    %c0_i32_0 = arith.constant 0 : i32
    return %arg0, %c0_i32 : i32, i32
  }
}

</mosaic_0001>

<llo_original>
// kernel: conditional_vae_forward.1
$region0: #{conditional_vae_forward.1}
  #allocation0 [shape = 'u32[]', space=smem, size = 0x4, offset = 0x4, fixed_abs, tag = 'smem constant byte address 0x4 - core index']
  #allocation1 [shape = 'u32[144,128]{1,0:T(1,128)}', space=vmem, size = 0x12000, scoped, tag = 'internal scratch']
  %s0 = inlined_call_operand.vmem [shape: f32[8,20], index: 0, kind: input, shape index: {}]
  %s1 = inlined_call_operand.vmem [shape: f32[8,8], index: 1, kind: input, shape index: {}]
  %s2 = inlined_call_operand.vmem [shape: f32[20,32], index: 2, kind: input, shape index: {}]
  %s3 = inlined_call_operand.vmem [shape: f32[32,16], index: 3, kind: input, shape index: {}]
  %s4 = inlined_call_operand.vmem [shape: f32[8,32], index: 4, kind: input, shape index: {}]
  %s5 = inlined_call_operand.vmem [shape: f32[4,32], index: 5, kind: input, shape index: {}]
  %s6 = inlined_call_operand.vmem [shape: f32[32,16], index: 6, kind: input, shape index: {}]
  %s7 = inlined_call_operand.vmem [shape: f32[1,96], index: 7, kind: input, shape index: {}]
  %s8 = inlined_call_operand.vmem [shape: f32[8,32], index: 8, kind: output, shape index: {}]
  %s9 = sld [smem:[#allocation0]]
  $region42: #{conditional_vae_forward.1} parent=0
    _
  %s11 = ssub.s32 1, %s9
  %s12 = scalar_select 0, %s11, %s9
  // Predicated region
  $region2: #{conditional_vae_forward.1} parent=0 // pred_check
    _
  $region3: #{conditional_vae_forward.1} parent=0 // pred_check_branch
    %14 = sbr.rel (0) target = $region5
  $region4: #{conditional_vae_forward.1} parent=0 // pred_region
    _
  $region5: #{conditional_vae_forward.1} parent=0 // pred_fallthru
    _
  // Predicated region
  $region6: #{conditional_vae_forward.1} parent=0 // pred_check
    _
  $region7: #{conditional_vae_forward.1} parent=0 // pred_check_branch
    %16 = sbr.rel (0) target = $region9
  $region8: #{conditional_vae_forward.1} parent=0 // pred_region
    _
  $region9: #{conditional_vae_forward.1} parent=0 // pred_fallthru
    _
  // Predicated region
  $region10: #{conditional_vae_forward.1} parent=0 // pred_check
    _
  $region11: #{conditional_vae_forward.1} parent=0 // pred_check_branch
    %18 = sbr.rel (0) target = $region13
  $region12: #{conditional_vae_forward.1} parent=0 // pred_region
    _
  $region13: #{conditional_vae_forward.1} parent=0 // pred_fallthru
    _
  // Predicated region
  $region14: #{conditional_vae_forward.1} parent=0 // pred_check
    _
  $region15: #{conditional_vae_forward.1} parent=0 // pred_check_branch
    %20 = sbr.rel (0) target = $region17
  $region16: #{conditional_vae_forward.1} parent=0 // pred_region
    _
  $region17: #{conditional_vae_forward.1} parent=0 // pred_fallthru
    _
  // Predicated region
  $region18: #{conditional_vae_forward.1} parent=0 // pred_check
    _
  $region19: #{conditional_vae_forward.1} parent=0 // pred_check_branch
    %22 = sbr.rel (0) target = $region21
  $region20: #{conditional_vae_forward.1} parent=0 // pred_region
    _
  $region21: #{conditional_vae_forward.1} parent=0 // pred_fallthru
    _
  // Predicated region
  $region22: #{conditional_vae_forward.1} parent=0 // pred_check
    _
  $region23: #{conditional_vae_forward.1} parent=0 // pred_check_branch
    %24 = sbr.rel (0) target = $region25
  $region24: #{conditional_vae_forward.1} parent=0 // pred_region
    _
  $region25: #{conditional_vae_forward.1} parent=0 // pred_fallthru
    _
  // Predicated region
  $region26: #{conditional_vae_forward.1} parent=0 // pred_check
    _
  $region27: #{conditional_vae_forward.1} parent=0 // pred_check_branch
    %26 = sbr.rel (0) target = $region29
  $region28: #{conditional_vae_forward.1} parent=0 // pred_region
    _
  $region29: #{conditional_vae_forward.1} parent=0 // pred_fallthru
    _
  // Predicated region
  $region30: #{conditional_vae_forward.1} parent=0 // pred_check
    _
  $region31: #{conditional_vae_forward.1} parent=0 // pred_check_branch
    %28 = sbr.rel (0) target = $region33
  $region32: #{conditional_vae_forward.1} parent=0 // pred_region
    _
  $region33: #{conditional_vae_forward.1} parent=0 // pred_fallthru
    _
  %v29 = vld [vmem:[%s0] sm:$0xff]
  %v30 = vld [vmem:[%s1] sm:$0xff]
  %v31 = vld [vmem:[%s7] sm:$0x1]
  %v32 = vld [vmem:[%s2] sm:$0xff]
  %v33 = vld [vmem:[%s2 + $0x8] sm:$0xff]
  %v34 = vld [vmem:[%s2 + $0x10] sm:$0xf]
  %v36 = vlaneseq
  %v37 = vshrl.u32 %v36, 7
  %v38 = vsub.s32 0, %v37
  %v39 = vrot.slane %v31, %v38
  %vm41 = vcmask 162816
  %v43 = vsel %vm41, %v29, 0
  %vm45 = vcmask 1043456
  %v47 = vsel %vm45, %v34, 0
  %49 = vmatprep.subr.mxu0 0.0
  %50 = vmatpush1.msra.mxu0 %v32
  %51 = vmatprep.subr.mxu0 0.0
  %52 = vmatpush1.msra.mxu0 %v33
  %53 = vmatprep.subr.mxu0 0.0
  %54 = vmatpush1.msra.mxu0 %v47
  %55 = vmatprep.subr.mxu0 0.0
  %56 = vmatpush1.msra.mxu0 0.0
  %57 = vmatprep.subr.mxu0 0.0
  %58 = vmatpush1.msra.mxu0 0.0
  %59 = vmatprep.subr.mxu0 0.0
  %60 = vmatpush1.msra.mxu0 0.0
  %61 = vmatprep.subr.mxu0 0.0
  %62 = vmatpush1.msra.mxu0 0.0
  %63 = vmatprep.subr.mxu0 0.0
  %64 = vmatpush1.msra.mxu0 0.0
  %65 = vmatprep.subr.mxu0 0.0
  %66 = vmatpush1.msra.mxu0 0.0
  %67 = vmatprep.subr.mxu0 0.0
  %68 = vmatpush1.msra.mxu0 0.0
  %69 = vmatprep.subr.mxu0 0.0
  %70 = vmatpush1.msra.mxu0 0.0
  %71 = vmatprep.subr.mxu0 0.0
  %72 = vmatpush1.msra.mxu0 0.0
  %73 = vmatprep.subr.mxu0 0.0
  %74 = vmatpush1.msra.mxu0 0.0
  %75 = vmatprep.subr.mxu0 0.0
  %76 = vmatpush1.msra.mxu0 0.0
  %77 = vmatprep.subr.mxu0 0.0
  %78 = vmatpush1.msra.mxu0 0.0
  %79 = vmatprep.subr.mxu0 0.0
  %80 = vmatpush1.msra.mxu0 0.0
  %81 = vmatprep.subr.mxu0 0.0
  %82 = vmatpush1.msra.mxu0 0.0
  %83 = vmatprep.subr.mxu0 0.0
  %84 = vmatpush1.msra.mxu0 0.0
  %85 = vmatprep.subr.mxu0 0.0
  %86 = vmatpush1.msra.mxu0 0.0
  %87 = vmatprep.subr.mxu0 0.0
  %88 = vmatpush1.msra.mxu0 0.0
  %89 = vmatprep.subr.mxu0 0.0
  %90 = vmatpush1.msra.mxu0 0.0
  %91 = vmatprep.subr.mxu0 0.0
  %92 = vmatpush1.msra.mxu0 0.0
  %93 = vmatprep.subr.mxu0 0.0
  %94 = vmatpush1.msra.mxu0 0.0
  %95 = vmatprep.subr.mxu0 0.0
  %96 = vmatpush1.msra.mxu0 0.0
  %97 = vmatprep.subr.mxu0 0.0
  %98 = vmatpush1.msra.mxu0 0.0
  %99 = vmatprep.subr.mxu0 0.0
  %100 = vmatpush1.msra.mxu0 0.0
  %101 = vmatprep.subr.mxu0 0.0
  %102 = vmatpush1.msra.mxu0 0.0
  %103 = vmatprep.subr.mxu0 0.0
  %104 = vmatpush1.msra.mxu0 0.0
  %105 = vmatprep.subr.mxu0 0.0
  %106 = vmatpush1.msra.mxu0 0.0
  %107 = vmatprep.subr.mxu0 0.0
  %108 = vmatpush1.msra.mxu0 0.0
  %109 = vmatprep.subr.mxu0 0.0
  %110 = vmatpush1.msra.mxu0 0.0
  %111 = vmatprep.subr.mxu0 0.0
  %112 = vmatpush1.msra.mxu0 0.0
  %113 = vmatprep.mubr.f32.mxu0 0.0
  %114 = vmatmul.mubr.f32.gmra.mrb[0].mxu0 %v43
  %v115 = vpop.f32.mrb[0].mxu0
  %v116 = vadd.f32 %v39, %v115
  %v117 = vpop.f32.mrb[0].mxu0
  %118 = vdwg.mxu0
  %v119 = vmax.f32 %v116, 0.0
  %v120 = vld [vmem:[%s3] sm:$0xff]
  %v121 = vld [vmem:[%s3 + $0x8] sm:$0xff]
  %v122 = vld [vmem:[%s3 + $0x10] sm:$0xff]
  %v123 = vld [vmem:[%s3 + $0x18] sm:$0xff]
  %124 = vrot.lane.b32.xlu0 %v39, 96
  %v125 = vpop.permute.xlu0 %124
  %vm127 = vcmask 261120
  %v129 = vsel %vm127, %v119, 0
  %131 = vmatprep.subr.mxu0 0.0
  %132 = vmatpush1.msra.mxu0 %v120
  %133 = vmatprep.subr.mxu0 0.0
  %134 = vmatpush1.msra.mxu0 %v121
  %135 = vmatprep.subr.mxu0 0.0
  %136 = vmatpush1.msra.mxu0 %v122
  %137 = vmatprep.subr.mxu0 0.0
  %138 = vmatpush1.msra.mxu0 %v123
  %139 = vmatprep.subr.mxu0 0.0
  %140 = vmatpush1.msra.mxu0 0.0
  %141 = vmatprep.subr.mxu0 0.0
  %142 = vmatpush1.msra.mxu0 0.0
  %143 = vmatprep.subr.mxu0 0.0
  %144 = vmatpush1.msra.mxu0 0.0
  %145 = vmatprep.subr.mxu0 0.0
  %146 = vmatpush1.msra.mxu0 0.0
  %147 = vmatprep.subr.mxu0 0.0
  %148 = vmatpush1.msra.mxu0 0.0
  %149 = vmatprep.subr.mxu0 0.0
  %150 = vmatpush1.msra.mxu0 0.0
  %151 = vmatprep.subr.mxu0 0.0
  %152 = vmatpush1.msra.mxu0 0.0
  %153 = vmatprep.subr.mxu0 0.0
  %154 = vmatpush1.msra.mxu0 0.0
  %155 = vmatprep.subr.mxu0 0.0
  %156 = vmatpush1.msra.mxu0 0.0
  %157 = vmatprep.subr.mxu0 0.0
  %158 = vmatpush1.msra.mxu0 0.0
  %159 = vmatprep.subr.mxu0 0.0
  %160 = vmatpush1.msra.mxu0 0.0
  %161 = vmatprep.subr.mxu0 0.0
  %162 = vmatpush1.msra.mxu0 0.0
  %163 = vmatprep.subr.mxu0 0.0
  %164 = vmatpush1.msra.mxu0 0.0
  %165 = vmatprep.subr.mxu0 0.0
  %166 = vmatpush1.msra.mxu0 0.0
  %167 = vmatprep.subr.mxu0 0.0
  %168 = vmatpush1.msra.mxu0 0.0
  %169 = vmatprep.subr.mxu0 0.0
  %170 = vmatpush1.msra.mxu0 0.0
  %171 = vmatprep.subr.mxu0 0.0
  %172 = vmatpush1.msra.mxu0 0.0
  %173 = vmatprep.subr.mxu0 0.0
  %174 = vmatpush1.msra.mxu0 0.0
  %175 = vmatprep.subr.mxu0 0.0
  %176 = vmatpush1.msra.mxu0 0.0
  %177 = vmatprep.subr.mxu0 0.0
  %178 = vmatpush1.msra.mxu0 0.0
  %179 = vmatprep.subr.mxu0 0.0
  %180 = vmatpush1.msra.mxu0 0.0
  %181 = vmatprep.subr.mxu0 0.0
  %182 = vmatpush1.msra.mxu0 0.0
  %183 = vmatprep.subr.mxu0 0.0
  %184 = vmatpush1.msra.mxu0 0.0
  %185 = vmatprep.subr.mxu0 0.0
  %186 = vmatpush1.msra.mxu0 0.0
  %187 = vmatprep.subr.mxu0 0.0
  %188 = vmatpush1.msra.mxu0 0.0
  %189 = vmatprep.subr.mxu0 0.0
  %190 = vmatpush1.msra.mxu0 0.0
  %191 = vmatprep.subr.mxu0 0.0
  %192 = vmatpush1.msra.mxu0 0.0
  %193 = vmatprep.subr.mxu0 0.0
  %194 = vmatpush1.msra.mxu0 0.0
  %195 = vmatprep.mubr.f32.mxu0 0.0
  %196 = vmatmul.mubr.f32.gmra.mrb[0].mxu0 %v129
  %v197 = vpop.f32.mrb[0].mxu0
  %v198 = vadd.f32 %v125, %v197
  %v199 = vpop.f32.mrb[0].mxu0
  %200 = vdwg.mxu0
  %v201 = vmul.f32 %v198, 0.5
  %v202 = vmul.f32 %v201, 1.442695
  %v203 = vpow.pop %v202
  %205 = vrot.lane.b32.xlu0 %v203, 120
  %v206 = vpop.permute.xlu0 %205
  %v208 = vmul.f32 %v30, %v206
  %v209 = vadd.f32 %v198, %v208
  %v210 = vld [vmem:[%s4] sm:$0xff]
  %v211 = vld [vmem:[%s5] sm:$0xf]
  %212 = vrot.lane.b32.xlu0 %v29, 112
  %v213 = vpop.permute.xlu0 %212
  %vm214 = vcmask 31744
  %v215 = vsel %vm214, %v213, 0
  %v218 = vsel %vm45, %v211, 0
  %220 = vmatprep.subr.mxu0 0.0
  %221 = vmatpush1.msra.mxu0 %v218
  %222 = vmatprep.subr.mxu0 0.0
  %223 = vmatpush1.msra.mxu0 0.0
  %224 = vmatprep.subr.mxu0 0.0
  %225 = vmatpush1.msra.mxu0 0.0
  %226 = vmatprep.subr.mxu0 0.0
  %227 = vmatpush1.msra.mxu0 0.0
  %228 = vmatprep.subr.mxu0 0.0
  %229 = vmatpush1.msra.mxu0 0.0
  %230 = vmatprep.subr.mxu0 0.0
  %231 = vmatpush1.msra.mxu0 0.0
  %232 = vmatprep.subr.mxu0 0.0
  %233 = vmatpush1.msra.mxu0 0.0
  %234 = vmatprep.subr.mxu0 0.0
  %235 = vmatpush1.msra.mxu0 0.0
  %236 = vmatprep.subr.mxu0 0.0
  %237 = vmatpush1.msra.mxu0 0.0
  %238 = vmatprep.subr.mxu0 0.0
  %239 = vmatpush1.msra.mxu0 0.0
  %240 = vmatprep.subr.mxu0 0.0
  %241 = vmatpush1.msra.mxu0 0.0
  %242 = vmatprep.subr.mxu0 0.0
  %243 = vmatpush1.msra.mxu0 0.0
  %244 = vmatprep.subr.mxu0 0.0
  %245 = vmatpush1.msra.mxu0 0.0
  %246 = vmatprep.subr.mxu0 0.0
  %247 = vmatpush1.msra.mxu0 0.0
  %248 = vmatprep.subr.mxu0 0.0
  %249 = vmatpush1.msra.mxu0 0.0
  %250 = vmatprep.subr.mxu0 0.0
  %251 = vmatpush1.msra.mxu0 0.0
  %252 = vmatprep.subr.mxu0 0.0
  %253 = vmatpush1.msra.mxu0 0.0
  %254 = vmatprep.subr.mxu0 0.0
  %255 = vmatpush1.msra.mxu0 0.0
  %256 = vmatprep.subr.mxu0 0.0
  %257 = vmatpush1.msra.mxu0 0.0
  %258 = vmatprep.subr.mxu0 0.0
  %259 = vmatpush1.msra.mxu0 0.0
  %260 = vmatprep.subr.mxu0 0.0
  %261 = vmatpush1.msra.mxu0 0.0
  %262 = vmatprep.subr.mxu0 0.0
  %263 = vmatpush1.msra.mxu0 0.0
  %264 = vmatprep.subr.mxu0 0.0
  %265 = vmatpush1.msra.mxu0 0.0
  %266 = vmatprep.subr.mxu0 0.0
  %267 = vmatpush1.msra.mxu0 0.0
  %268 = vmatprep.subr.mxu0 0.0
  %269 = vmatpush1.msra.mxu0 0.0
  %270 = vmatprep.subr.mxu0 0.0
  %271 = vmatpush1.msra.mxu0 0.0
  %272 = vmatprep.subr.mxu0 0.0
  %273 = vmatpush1.msra.mxu0 0.0
  %274 = vmatprep.subr.mxu0 0.0
  %275 = vmatpush1.msra.mxu0 0.0
  %276 = vmatprep.subr.mxu0 0.0
  %277 = vmatpush1.msra.mxu0 0.0
  %278 = vmatprep.subr.mxu0 0.0
  %279 = vmatpush1.msra.mxu0 0.0
  %280 = vmatprep.subr.mxu0 0.0
  %281 = vmatpush1.msra.mxu0 0.0
  %282 = vmatprep.subr.mxu0 0.0
  %283 = vmatpush1.msra.mxu0 0.0
  %284 = vmatprep.mubr.f32.mxu0 0.0
  %285 = vmatmul.mubr.f32.gmra.mrb[0].mxu0 %v215
  %v286 = vpop.f32.mrb[0].mxu0
  %v287 = vadd.f32 0.0, %v286
  %v288 = vpop.f32.mrb[0].mxu0
  %289 = vdwg.mxu0
  %vm290 = vcmask 64512
  %v292 = vsel %vm290, %v209, 0
  %294 = vmatprep.subr.mxu0 0.0
  %295 = vmatpush1.msra.mxu0 %v210
  %296 = vmatprep.subr.mxu0 0.0
  %297 = vmatpush1.msra.mxu0 0.0
  %298 = vmatprep.subr.mxu0 0.0
  %299 = vmatpush1.msra.mxu0 0.0
  %300 = vmatprep.subr.mxu0 0.0
  %301 = vmatpush1.msra.mxu0 0.0
  %302 = vmatprep.subr.mxu0 0.0
  %303 = vmatpush1.msra.mxu0 0.0
  %304 = vmatprep.subr.mxu0 0.0
  %305 = vmatpush1.msra.mxu0 0.0
  %306 = vmatprep.subr.mxu0 0.0
  %307 = vmatpush1.msra.mxu0 0.0
  %308 = vmatprep.subr.mxu0 0.0
  %309 = vmatpush1.msra.mxu0 0.0
  %310 = vmatprep.subr.mxu0 0.0
  %311 = vmatpush1.msra.mxu0 0.0
  %312 = vmatprep.subr.mxu0 0.0
  %313 = vmatpush1.msra.mxu0 0.0
  %314 = vmatprep.subr.mxu0 0.0
  %315 = vmatpush1.msra.mxu0 0.0
  %316 = vmatprep.subr.mxu0 0.0
  %317 = vmatpush1.msra.mxu0 0.0
  %318 = vmatprep.subr.mxu0 0.0
  %319 = vmatpush1.msra.mxu0 0.0
  %320 = vmatprep.subr.mxu0 0.0
  %321 = vmatpush1.msra.mxu0 0.0
  %322 = vmatprep.subr.mxu0 0.0
  %323 = vmatpush1.msra.mxu0 0.0
  %324 = vmatprep.subr.mxu0 0.0
  %325 = vmatpush1.msra.mxu0 0.0
  %326 = vmatprep.subr.mxu0 0.0
  %327 = vmatpush1.msra.mxu0 0.0
  %328 = vmatprep.subr.mxu0 0.0
  %329 = vmatpush1.msra.mxu0 0.0
  %330 = vmatprep.subr.mxu0 0.0
  %331 = vmatpush1.msra.mxu0 0.0
  %332 = vmatprep.subr.mxu0 0.0
  %333 = vmatpush1.msra.mxu0 0.0
  %334 = vmatprep.subr.mxu0 0.0
  %335 = vmatpush1.msra.mxu0 0.0
  %336 = vmatprep.subr.mxu0 0.0
  %337 = vmatpush1.msra.mxu0 0.0
  %338 = vmatprep.subr.mxu0 0.0
  %339 = vmatpush1.msra.mxu0 0.0
  %340 = vmatprep.subr.mxu0 0.0
  %341 = vmatpush1.msra.mxu0 0.0
  %342 = vmatprep.subr.mxu0 0.0
  %343 = vmatpush1.msra.mxu0 0.0
  %344 = vmatprep.subr.mxu0 0.0
  %345 = vmatpush1.msra.mxu0 0.0
  %346 = vmatprep.subr.mxu0 0.0
  %347 = vmatpush1.msra.mxu0 0.0
  %348 = vmatprep.subr.mxu0 0.0
  %349 = vmatpush1.msra.mxu0 0.0
  %350 = vmatprep.subr.mxu0 0.0
  %351 = vmatpush1.msra.mxu0 0.0
  %352 = vmatprep.subr.mxu0 0.0
  %353 = vmatpush1.msra.mxu0 0.0
  %354 = vmatprep.subr.mxu0 0.0
  %355 = vmatpush1.msra.mxu0 0.0
  %356 = vmatprep.subr.mxu0 0.0
  %357 = vmatpush1.msra.mxu0 0.0
  %358 = vmatprep.mubr.f32.mxu0 0.0
  %359 = vmatmul.mubr.f32.gmra.mrb[0].mxu0 %v292
  %v360 = vpop.f32.mrb[0].mxu0
  %v361 = vadd.f32 %v287, %v360
  %v362 = vpop.f32.mrb[0].mxu0
  %363 = vdwg.mxu0
  %364 = vrot.lane.b32.xlu0 %v39, 80
  %v365 = vpop.permute.xlu0 %364
  %v367 = vadd.f32 %v361, %v365
  %v368 = vmax.f32 %v367, 0.0
  %v369 = vld [vmem:[%s6] sm:$0xff]
  %v370 = vld [vmem:[%s6 + $0x8] sm:$0xff]
  %v371 = vld [vmem:[%s6 + $0x10] sm:$0xff]
  %v372 = vld [vmem:[%s6 + $0x18] sm:$0xff]
  %373 = vrot.lane.b32.xlu0 %v39, 48
  %v374 = vpop.permute.xlu0 %373
  %v377 = vsel %vm127, %v368, 0
  %379 = vmatprep.subr.mxu0 0.0
  %380 = vmatpush1.msra.mxu0 %v369
  %381 = vmatprep.subr.mxu0 0.0
  %382 = vmatpush1.msra.mxu0 %v370
  %383 = vmatprep.subr.mxu0 0.0
  %384 = vmatpush1.msra.mxu0 %v371
  %385 = vmatprep.subr.mxu0 0.0
  %386 = vmatpush1.msra.mxu0 %v372
  %387 = vmatprep.subr.mxu0 0.0
  %388 = vmatpush1.msra.mxu0 0.0
  %389 = vmatprep.subr.mxu0 0.0
  %390 = vmatpush1.msra.mxu0 0.0
  %391 = vmatprep.subr.mxu0 0.0
  %392 = vmatpush1.msra.mxu0 0.0
  %393 = vmatprep.subr.mxu0 0.0
  %394 = vmatpush1.msra.mxu0 0.0
  %395 = vmatprep.subr.mxu0 0.0
  %396 = vmatpush1.msra.mxu0 0.0
  %397 = vmatprep.subr.mxu0 0.0
  %398 = vmatpush1.msra.mxu0 0.0
  %399 = vmatprep.subr.mxu0 0.0
  %400 = vmatpush1.msra.mxu0 0.0
  %401 = vmatprep.subr.mxu0 0.0
  %402 = vmatpush1.msra.mxu0 0.0
  %403 = vmatprep.subr.mxu0 0.0
  %404 = vmatpush1.msra.mxu0 0.0
  %405 = vmatprep.subr.mxu0 0.0
  %406 = vmatpush1.msra.mxu0 0.0
  %407 = vmatprep.subr.mxu0 0.0
  %408 = vmatpush1.msra.mxu0 0.0
  %409 = vmatprep.subr.mxu0 0.0
  %410 = vmatpush1.msra.mxu0 0.0
  %411 = vmatprep.subr.mxu0 0.0
  %412 = vmatpush1.msra.mxu0 0.0
  %413 = vmatprep.subr.mxu0 0.0
  %414 = vmatpush1.msra.mxu0 0.0
  %415 = vmatprep.subr.mxu0 0.0
  %416 = vmatpush1.msra.mxu0 0.0
  %417 = vmatprep.subr.mxu0 0.0
  %418 = vmatpush1.msra.mxu0 0.0
  %419 = vmatprep.subr.mxu0 0.0
  %420 = vmatpush1.msra.mxu0 0.0
  %421 = vmatprep.subr.mxu0 0.0
  %422 = vmatpush1.msra.mxu0 0.0
  %423 = vmatprep.subr.mxu0 0.0
  %424 = vmatpush1.msra.mxu0 0.0
  %425 = vmatprep.subr.mxu0 0.0
  %426 = vmatpush1.msra.mxu0 0.0
  %427 = vmatprep.subr.mxu0 0.0
  %428 = vmatpush1.msra.mxu0 0.0
  %429 = vmatprep.subr.mxu0 0.0
  %430 = vmatpush1.msra.mxu0 0.0
  %431 = vmatprep.subr.mxu0 0.0
  %432 = vmatpush1.msra.mxu0 0.0
  %433 = vmatprep.subr.mxu0 0.0
  %434 = vmatpush1.msra.mxu0 0.0
  %435 = vmatprep.subr.mxu0 0.0
  %436 = vmatpush1.msra.mxu0 0.0
  %437 = vmatprep.subr.mxu0 0.0
  %438 = vmatpush1.msra.mxu0 0.0
  %439 = vmatprep.subr.mxu0 0.0
  %440 = vmatpush1.msra.mxu0 0.0
  %441 = vmatprep.subr.mxu0 0.0
  %442 = vmatpush1.msra.mxu0 0.0
  %443 = vmatprep.mubr.f32.mxu0 0.0
  %444 = vmatmul.mubr.f32.gmra.mrb[0].mxu0 %v377
  %v445 = vpop.f32.mrb[0].mxu0
  %v446 = vadd.f32 %v374, %v445
  %v447 = vpop.f32.mrb[0].mxu0
  %448 = vdwg.mxu0
  %450 = vrot.lane.b32.xlu0 %v198, 16
  %v451 = vpop.permute.xlu0 %450
  %vm453 = vcmask 130048
  %v454 = vsel %vm453, %v446, %v451
  %455 = vst.msk [vmem:[%s8] sm:$0xff] %vm127, %v454
  // Predicated region
  $region34: #{conditional_vae_forward.1} parent=0 // pred_check
    _
  $region35: #{conditional_vae_forward.1} parent=0 // pred_check_branch
    %457 = sbr.rel (0) target = $region37
  $region36: #{conditional_vae_forward.1} parent=0 // pred_region
    _
  $region37: #{conditional_vae_forward.1} parent=0 // pred_fallthru
    _
  // Predicated region
  $region38: #{conditional_vae_forward.1} parent=0 // pred_check
    _
  $region39: #{conditional_vae_forward.1} parent=0 // pred_check_branch
    %459 = sbr.rel (0) target = $region41
  $region40: #{conditional_vae_forward.1} parent=0 // pred_region
    _
  $region41: #{conditional_vae_forward.1} parent=0 // pred_fallthru
    _

</llo_original>
